<compile_context>
chip_gen: v7x
topology: tpu7x:2x2x1
jax: 0.10.0
libtpu: 0.0.40
codegen_flags: <defaults>
</compile_context>

<pallas_src>
import functools

import jax
import jax.numpy as jnp
from jax.experimental import pallas as pl
from jax.experimental.pallas import tpu as pltpu


def _embedding_kernel(*refs, batch_normalize, unit_normalize, eps):
    """Process one (TB, F) row-tile of embeddings.

    refs (batch_normalize=True):  x_ref, mean_ref, var_ref, o_ref
    refs (batch_normalize=False): x_ref, o_ref
    """
    if batch_normalize:
        x_ref, mean_ref, var_ref, o_ref = refs
    else:
        x_ref, o_ref = refs
        mean_ref = var_ref = None

    x = x_ref[...].astype(jnp.float32)

    if batch_normalize:
        # eval-mode BatchNorm1d(affine=False): (x - mean) / sqrt(var + eps)
        inv_std = jax.lax.rsqrt(var_ref[...].astype(jnp.float32) + eps)   # EUP
        x = (x - mean_ref[...].astype(jnp.float32)) * inv_std             # VPU

    if unit_normalize:
        # L2 norm along features (per-row -> ragged/garbage edge rows cannot
        # contaminate valid rows; their stores are masked by Pallas).
        sq = jnp.sum(x * x, axis=-1, keepdims=True)                       # (TB, 1)
        x = x * jax.lax.rsqrt(sq)                                         # EUP + VPU

    o_ref[...] = x.astype(o_ref.dtype)


def _round_up(n, m):
    return ((n + m - 1) // m) * m


def embedding_forward_pallas(embedding, running_mean=None, running_var=None, *,
                             batch_normalize=False, unit_normalize=False,
                             eps=1e-5):
    """Embedding.forward.

    embedding    : (B, F) float array (f32 or bf16)
    running_mean : (F,) BatchNorm1d running mean (only used if batch_normalize)
    running_var  : (F,) BatchNorm1d running var  (only used if batch_normalize)
    returns      : (B, F), same dtype as `embedding`
    """
    # Default config is identity: no HBM traffic, no kernel launch.
    if not batch_normalize and not unit_normalize:
        return embedding

    B, F = embedding.shape
    dtype = embedding.dtype
    itemsize = jnp.dtype(dtype).itemsize

    # --- adaptive row-tile size -------------------------------------------
    try:
        vmem_cap = int(pltpu.get_tpu_info().vmem_capacity_bytes)
    except Exception:                                    # pragma: no cover
        vmem_cap = 64 * 1024 * 1024                      # conservative (v7x)

    # Budget for pipeline buffers + f32 compute intermediates per grid step:
    #   2 (double-buffer) x 2 (in + out) x TB*F*itemsize  +  ~3 x TB*F*4 (f32 temps)
    budget = min(vmem_cap // 2, 32 * 1024 * 1024)
    per_row = F * (4 * itemsize + 3 * 4)

    if B <= 8:
        TB = B                                           # block dim == full array dim
    else:
        TB = max(8, (budget // per_row) // 8 * 8)        # largest sublane-aligned tile
        TB = min(TB, (B // 8) * 8)                       # stay within the array
        if B >= 16:
            # >= 2 grid steps so v7x megacore can shard the stream (free on v5e/v6e).
            TB = min(TB, _round_up((B + 1) // 2, 8))

    grid = (pl.cdiv(B, TB),)

    # --- specs --------------------------------------------------------------
    in_specs = [pl.BlockSpec((TB, F), lambda i: (i, 0))]
    args = [embedding]
    if batch_normalize:
        if running_mean is None:
            running_mean = jnp.zeros((F,), jnp.float32)
        if running_var is None:
            running_var = jnp.ones((F,), jnp.float32)
        mean2 = running_mean.astype(jnp.float32).reshape(1, F)
        var2 = running_var.astype(jnp.float32).reshape(1, F)
        in_specs += [pl.BlockSpec((1, F), lambda i: (0, 0)),
                     pl.BlockSpec((1, F), lambda i: (0, 0))]
        args += [mean2, var2]

    kernel = functools.partial(_embedding_kernel,
                               batch_normalize=batch_normalize,
                               unit_normalize=unit_normalize,
                               eps=eps)

    vmem_limit = int(min(vmem_cap * 3 // 4, 96 * 1024 * 1024))

    out = pl.pallas_call(
        kernel,
        out_shape=jax.ShapeDtypeStruct((B, F), dtype),
        grid=grid,
        in_specs=in_specs,
        out_specs=pl.BlockSpec((TB, F), lambda i: (i, 0)),
        compiler_params=pltpu.CompilerParams(
            dimension_semantics=("parallel",),           # row tiles are independent
            vmem_limit_bytes=vmem_limit,
        ),
    )(*args)

    return out


def embedding_forward_ref(embedding, running_mean=None, running_var=None, *,
                          batch_normalize=False, unit_normalize=False, eps=1e-5):
    """Pure-JAX reference matching PyTorch Embedding.forward (eval mode)."""
    y = embedding.astype(jnp.float32)
    if batch_normalize:
        y = (y - running_mean) / jnp.sqrt(running_var + eps)
    if unit_normalize:
        norm = jnp.sqrt(jnp.sum(y * y, axis=1, keepdims=True))
        y = y / norm
    return y.astype(embedding.dtype)


if __name__ == "__main__":
    # Small shapes consistent with the module: pooled speaker embeddings.
    batch, n_features = 8, 512

    key = jax.random.PRNGKey(0)
    k_x, k_m, k_v, k_r = jax.random.split(key, 4)
    emb = jax.random.normal(k_x, (batch, n_features), jnp.float32)
    running_mean = 0.1 * jax.random.normal(k_m, (n_features,), jnp.float32)
    running_var = jax.random.uniform(k_v, (n_features,), jnp.float32,
                                     minval=0.5, maxval=1.5)

    # Full path: batch_normalize=True, unit_normalize=True.
    out = embedding_forward_pallas(emb, running_mean, running_var,
                                   batch_normalize=True, unit_normalize=True)
    out = jax.block_until_ready(out)
    ref = embedding_forward_ref(emb, running_mean, running_var,
                                batch_normalize=True, unit_normalize=True)
    assert out.shape == (batch, n_features), out.shape
    assert jnp.allclose(out, ref, atol=1e-5, rtol=1e-5), float(
        jnp.max(jnp.abs(out - ref)))

    # Ragged shapes (B not multiple of 8, F not multiple of 128), unit_normalize only.
    emb2 = jax.random.normal(k_r, (10, 200), jnp.float32)
    out2 = jax.block_until_ready(
        embedding_forward_pallas(emb2, unit_normalize=True))
    ref2 = embedding_forward_ref(emb2, unit_normalize=True)
    assert out2.shape == (10, 200), out2.shape
    assert jnp.allclose(out2, ref2, atol=1e-5, rtol=1e-5), float(
        jnp.max(jnp.abs(out2 - ref2)))

    # Default config (both flags False) -> identity, no kernel launch / copy.
    out_id = embedding_forward_pallas(emb)
    out_id = jax.block_until_ready(out_id)
    assert jnp.allclose(out_id, emb, atol=0.0, rtol=0.0)

    print("KERNEL_OK")
</pallas_src>

<mosaic_0001>
module attributes {stable_mosaic.version = 11 : i64} {
  func.func @_embedding_kernel(%arg0: i32, %arg1: memref<8x512xf32, #tpu.memory_space<vmem>>, %arg2: memref<1x512xf32, #tpu.memory_space<vmem>>, %arg3: memref<1x512xf32, #tpu.memory_space<vmem>>, %arg4: memref<8x512xf32, #tpu.memory_space<vmem>>) attributes {dimension_semantics = [#tpu.dimension_semantics<parallel>], iteration_bounds = array<i64: 1>, scalar_prefetch = 0 : i64, scratch_operands = 0 : i64, tpu.core_type = #tpu.core_type<tc>, window_params = [{transform_indices = @transform_0, window_bounds = array<i64: 8, 512>}, {pipeline_mode = #tpu.pipeline_mode<synchronous>, transform_indices = @transform_1, window_bounds = array<i64: 1, 512>}, {pipeline_mode = #tpu.pipeline_mode<synchronous>, transform_indices = @transform_2, window_bounds = array<i64: 1, 512>}, {transform_indices = @transform_3, window_bounds = array<i64: 8, 512>}]} {
    %c0 = arith.constant 0 : index
    %c0_0 = arith.constant 0 : index
    %0 = vector.load %arg1[%c0, %c0_0] : memref<8x512xf32, #tpu.memory_space<vmem>>, vector<8x512xf32>
    %c0_1 = arith.constant 0 : index
    %c0_2 = arith.constant 0 : index
    %1 = vector.load %arg3[%c0_1, %c0_2] : memref<1x512xf32, #tpu.memory_space<vmem>>, vector<1x512xf32>
    %cst = arith.constant 9.99999974E-6 : f32
    %2 = vector.broadcast %cst : f32 to vector<1x512xf32>
    %3 = arith.addf %1, %2 : vector<1x512xf32>
    %4 = math.rsqrt %3 : vector<1x512xf32>
    %c0_3 = arith.constant 0 : index
    %c0_4 = arith.constant 0 : index
    %5 = vector.load %arg2[%c0_3, %c0_4] : memref<1x512xf32, #tpu.memory_space<vmem>>, vector<1x512xf32>
    %6 = vector.broadcast %5 : vector<1x512xf32> to vector<8x512xf32>
    %7 = arith.subf %0, %6 : vector<8x512xf32>
    %8 = vector.broadcast %4 : vector<1x512xf32> to vector<8x512xf32>
    %9 = arith.mulf %7, %8 : vector<8x512xf32>
    %10 = arith.mulf %9, %9 : vector<8x512xf32>
    %cst_5 = arith.constant dense<0.000000e+00> : vector<8xf32>
    %11 = vector.multi_reduction <add>, %10, %cst_5 [1] : vector<8x512xf32> to vector<8xf32>
    %12 = vector.shape_cast %11 : vector<8xf32> to vector<8x1xf32>
    %13 = math.rsqrt %12 : vector<8x1xf32>
    %14 = vector.broadcast %13 : vector<8x1xf32> to vector<8x512xf32>
    %15 = arith.mulf %9, %14 : vector<8x512xf32>
    %c0_6 = arith.constant 0 : index
    %c0_7 = arith.constant 0 : index
    %16 = vector.load %arg4[%c0_6, %c0_7] : memref<8x512xf32, #tpu.memory_space<vmem>>, vector<8x512xf32>
    tpu.vector_store %arg4[%c0_6, %c0_7], %15 {strides = array<i32>} : memref<8x512xf32, #tpu.memory_space<vmem>>, vector<8x512xf32>,
    return
  }
  func.func @transform_0(%arg0: i32) -> (i32, i32) {
    %c0_i32 = arith.constant 0 : i32
    %c0_i32_0 = arith.constant 0 : i32
    return %arg0, %c0_i32 : i32, i32
  }
  func.func @transform_1(%arg0: i32) -> (i32, i32) {
    %c0_i32 = arith.constant 0 : i32
    %c0_i32_0 = arith.constant 0 : i32
    %c0_i32_1 = arith.constant 0 : i32
    return %c0_i32, %c0_i32_0 : i32, i32
  }
  func.func @transform_2(%arg0: i32) -> (i32, i32) {
    %c0_i32 = arith.constant 0 : i32
    %c0_i32_0 = arith.constant 0 : i32
    %c0_i32_1 = arith.constant 0 : i32
    return %c0_i32, %c0_i32_0 : i32, i32
  }
  func.func @transform_3(%arg0: i32) -> (i32, i32) {
    %c0_i32 = arith.constant 0 : i32
    %c0_i32_0 = arith.constant 0 : i32
    return %arg0, %c0_i32 : i32, i32
  }
}

</mosaic_0001>

<llo_original>
// kernel: tpu_custom_call.1
$region0: #{tpu_custom_call.1}
  #allocation0 [shape = 'u32[]', space=smem, size = 0x4, offset = 0x4, fixed_abs, tag = 'smem constant byte address 0x4 - core index']
  #allocation1 [shape = 'u32[144,128]{1,0:T(1,128)}', space=vmem, size = 0x12000, scoped, tag = 'internal scratch']
  %s0 = inlined_call_operand.hbm [shape: f32[8,512], index: 0, kind: input, shape index: {}]
  %s1 = inlined_call_operand.hbm [shape: f32[1,512], index: 1, kind: input, shape index: {}]
  %s2 = inlined_call_operand.vmem [shape: f32[1,512], index: 2, kind: input, shape index: {}]
  %s3 = inlined_call_operand.hbm [shape: f32[8,512], index: 3, kind: output, shape index: {}]
  %s4 = sld [smem:[#allocation0]]
  $region30: #{tpu_custom_call.1} parent=0
    _
  %s6 = ssub.s32 1, %s4
  %s7 = scalar_select 0, %s6, %s4
  $region1: #{tpu_custom_call.1} parent=0
    #allocation2 [shape = 'u8[16384]{0}', space=vmem, size = 0x4000, scoped, tag = 'input window, operand 0, single buffered']
    #allocation3 [shape = 's32[1]{0}', space=sflag, size = 0x4, scoped, tag = 'scoped memory for tpu_custom_call.1']
    #allocation4 [shape = 's32[1]{0}', space=sflag, size = 0x4, scoped, tag = 'scoped memory for tpu_custom_call.1']
    #allocation5 [shape = 'u8[2048]{0}', space=vmem, size = 0x800, scoped, tag = 'input window, operand 1, single buffered']
    #allocation6 [shape = 's32[1]{0}', space=sflag, size = 0x4, scoped, tag = 'scoped memory for tpu_custom_call.1']
    #allocation7 [shape = 'u8[16384]{0}', space=vmem, size = 0x4000, scoped, tag = 'output window, operand 0, single buffered']
    %8 = vsyncpa [#allocation3], 0
    %9 = vsyncpa [#allocation6], 0
    %10 = vsyncpa [#allocation4], 0
    // Predicated region
    $region2: #{tpu_custom_call.1} parent=1 // pred_check
      _
    $region3: #{tpu_custom_call.1} parent=1 // pred_check_branch
      %12 = sbr.rel (0) target = $region5
    $region4: #{tpu_custom_call.1} parent=1 // pred_region
      %s14 = ssub.s32 512, 512
      %15 = vsyncadd [#allocation3], %s14
      %s17 = sshll.u32 [#allocation2], 4
      %s18 = int_to_ptr.vmem [resolvable:$true] %s17
      %20 = dma.hbm_to_vmem [thread:$0]  %s0, 512, %s18, [#allocation3]
    $region5: #{tpu_custom_call.1} parent=1 // pred_fallthru
      _
    // Predicated region
    $region6: #{tpu_custom_call.1} parent=1 // pred_check
      _
    $region7: #{tpu_custom_call.1} parent=1 // pred_check_branch
      %22 = sbr.rel (0) target = $region9
    $region8: #{tpu_custom_call.1} parent=1 // pred_region
      %s24 = ssub.s32 64, 64
      %25 = vsyncadd [#allocation6], %s24
      %s27 = sshll.u32 [#allocation5], 4
      %s28 = int_to_ptr.vmem [resolvable:$true] %s27
      %30 = dma.hbm_to_vmem [thread:$0]  %s1, 64, %s28, [#allocation6]
    $region9: #{tpu_custom_call.1} parent=1 // pred_fallthru
      _
    // Predicated region
    $region10: #{tpu_custom_call.1} parent=1 // pred_check
      _
    $region11: #{tpu_custom_call.1} parent=1 // pred_check_branch
      %32 = sbr.rel (0) target = $region13
    $region12: #{tpu_custom_call.1} parent=1 // pred_region
      _
    $region13: #{tpu_custom_call.1} parent=1 // pred_fallthru
      _
    // Predicated region
    $region14: #{tpu_custom_call.1} parent=1 // pred_check
      _
    $region15: #{tpu_custom_call.1} parent=1 // pred_check_branch
      %34 = sbr.rel (0) target = $region17
    $region16: #{tpu_custom_call.1} parent=1 // pred_region
      %35 = dma.done [#allocation3], 512
    $region17: #{tpu_custom_call.1} parent=1 // pred_fallthru
      _
    // Predicated region
    $region18: #{tpu_custom_call.1} parent=1 // pred_check
      _
    $region19: #{tpu_custom_call.1} parent=1 // pred_check_branch
      %37 = sbr.rel (0) target = $region21
    $region20: #{tpu_custom_call.1} parent=1 // pred_region
      %38 = dma.done [#allocation6], 64
    $region21: #{tpu_custom_call.1} parent=1 // pred_fallthru
      _
    %v39 = vld [vmem:[#allocation2] sm:$0xff]
    %v40 = vld [vmem:[#allocation2 + $0x8] sm:$0xff]
    %v41 = vld [vmem:[#allocation2 + $0x10] sm:$0xff]
    %v42 = vld [vmem:[#allocation2 + $0x18] sm:$0xff]
    %v43 = vld [vmem:[%s2] sm:$0xf]
    %v44 = vadd.f32 %v43, 1e-05
    %v45 = vrsqrt.pop %v44
    %v46 = vld [vmem:[#allocation5] sm:$0xf]
    %v48 = vlaneseq
    %v49 = vshrl.u32 %v48, 7
    %v50 = vsub.s32 0, %v49
    %v51 = vrot.slane %v46, %v50
    %v52 = vlaneseq
    %v53 = vshrl.u32 %v52, 7
    %v54 = vsub.s32 1, %v53
    %v55 = vrot.slane %v46, %v54
    %v56 = vlaneseq
    %v57 = vshrl.u32 %v56, 7
    %v58 = vsub.s32 2, %v57
    %v59 = vrot.slane %v46, %v58
    %v60 = vlaneseq
    %v61 = vshrl.u32 %v60, 7
    %v62 = vsub.s32 3, %v61
    %v63 = vrot.slane %v46, %v62
    %v68 = vsub.f32 %v39, %v51
    %v69 = vsub.f32 %v40, %v55
    %v70 = vsub.f32 %v41, %v59
    %v71 = vsub.f32 %v42, %v63
    %v73 = vlaneseq
    %v74 = vshrl.u32 %v73, 7
    %v75 = vsub.s32 0, %v74
    %v76 = vrot.slane %v45, %v75
    %v77 = vlaneseq
    %v78 = vshrl.u32 %v77, 7
    %v79 = vsub.s32 1, %v78
    %v80 = vrot.slane %v45, %v79
    %v81 = vlaneseq
    %v82 = vshrl.u32 %v81, 7
    %v83 = vsub.s32 2, %v82
    %v84 = vrot.slane %v45, %v83
    %v85 = vlaneseq
    %v86 = vshrl.u32 %v85, 7
    %v87 = vsub.s32 3, %v86
    %v88 = vrot.slane %v45, %v87
    %v93 = vmul.f32 %v68, %v76
    %v94 = vmul.f32 %v69, %v80
    %v95 = vmul.f32 %v70, %v84
    %v96 = vmul.f32 %v71, %v88
    %v97 = vmul.f32 %v93, %v93
    %v98 = vmul.f32 %v94, %v94
    %v99 = vmul.f32 %v95, %v95
    %v100 = vmul.f32 %v96, %v96
    %v101 = vadd.f32 %v97, %v98
    %v102 = vadd.f32 %v101, %v99
    %v103 = vadd.f32 %v102, %v100
    %104 = vadd.xlane.f32.xlu0 %v103
    %v105 = vpop.xlane.xlu0 %104
    %v106 = vrsqrt.pop %v105
    %v107 = vmul.f32 %v93, %v106
    %v108 = vmul.f32 %v94, %v106
    %v109 = vmul.f32 %v95, %v106
    %v110 = vmul.f32 %v96, %v106
    %111 = vst [vmem:[#allocation7] sm:$0xff] %v107
    %112 = vst [vmem:[#allocation7 + $0x8] sm:$0xff] %v108
    %113 = vst [vmem:[#allocation7 + $0x10] sm:$0xff] %v109
    %114 = vst [vmem:[#allocation7 + $0x18] sm:$0xff] %v110
    // Predicated region
    $region22: #{tpu_custom_call.1} parent=1 // pred_check
      _
    $region23: #{tpu_custom_call.1} parent=1 // pred_check_branch
      %116 = sbr.rel (0) target = $region25
    $region24: #{tpu_custom_call.1} parent=1 // pred_region
      %s118 = ssub.s32 512, 512
      %119 = vsyncadd [#allocation4], %s118
      %s121 = sshll.u32 [#allocation7], 4
      %s122 = int_to_ptr.vmem [resolvable:$true] %s121
      %124 = dma.vmem_to_hbm [thread:$0]  %s122, 512, %s3, [#allocation4]
    $region25: #{tpu_custom_call.1} parent=1 // pred_fallthru
      _
    // Predicated region
    $region26: #{tpu_custom_call.1} parent=1 // pred_check
      _
    $region27: #{tpu_custom_call.1} parent=1 // pred_check_branch
      %126 = sbr.rel (0) target = $region29
    $region28: #{tpu_custom_call.1} parent=1 // pred_region
      %127 = dma.done [#allocation4], 512
    $region29: #{tpu_custom_call.1} parent=1 // pred_fallthru
      _
    %128 = vsyncpa [#allocation3], 1
    %129 = vsyncpa [#allocation6], 1
    %130 = vsyncpa [#allocation4], 1

</llo_original>
